<compile_context>
chip_gen: v6e
topology: v6e:2x2x1
jax: 0.10.0
libtpu: 0.0.40
codegen_flags: <defaults>
</compile_context>

<pallas_src>
import functools

import jax
import jax.numpy as jnp
from jax.experimental import pallas as pl
from jax.experimental.pallas import tpu as pltpu


# ----------------------------------------------------------------------------
# Tile-size helper: largest tile <= preferred that divides `dim` and is
# `align`-aligned; falls back to the full dim (block == array dim is always
# legal w.r.t. the (8, 128) constraint).
# ----------------------------------------------------------------------------
def _pick_tile(dim, preferred, align):
    if dim <= preferred:
        return dim
    t = (preferred // align) * align
    while t >= align:
        if dim % t == 0:
            return t
        t -= align
    return dim


# ----------------------------------------------------------------------------
# Tiled linear projection kernels (to_q/to_k/to_v no bias, to_out with bias).
# Grid = (M//tm, N//tn, K//tk), f32 accumulator in VMEM, K axis innermost.
# ----------------------------------------------------------------------------
def _matmul_kernel(x_ref, w_ref, o_ref, acc_ref):
    @pl.when(pl.program_id(2) == 0)
    def _init():
        acc_ref[...] = jnp.zeros(acc_ref.shape, acc_ref.dtype)

    acc_ref[...] += jnp.dot(x_ref[...], w_ref[...],
                            preferred_element_type=jnp.float32)

    @pl.when(pl.program_id(2) == pl.num_programs(2) - 1)
    def _finalize():
        o_ref[...] = acc_ref[...].astype(o_ref.dtype)


def _matmul_bias_kernel(x_ref, w_ref, b_ref, o_ref, acc_ref):
    @pl.when(pl.program_id(2) == 0)
    def _init():
        acc_ref[...] = jnp.zeros(acc_ref.shape, acc_ref.dtype)

    acc_ref[...] += jnp.dot(x_ref[...], w_ref[...],
                            preferred_element_type=jnp.float32)

    @pl.when(pl.program_id(2) == pl.num_programs(2) - 1)
    def _finalize():
        o_ref[...] = (acc_ref[...] + b_ref[...].astype(jnp.float32)
                      ).astype(o_ref.dtype)


def pallas_matmul(x2d, w, b=None, *, tm_pref=512, tn_pref=256, tk_pref=512):
    """y = x2d @ w (+ b).  x2d: (M, K), w: (K, N), b: (N,) or None."""
    M, K = x2d.shape
    K2, N = w.shape
    assert K == K2
    tm = _pick_tile(M, tm_pref, 8)
    tn = _pick_tile(N, tn_pref, 128)
    tk = _pick_tile(K, tk_pref, 128)
    grid = (M // tm, N // tn, K // tk)

    x_spec = pl.BlockSpec((tm, tk), lambda i, j, k: (i, k))
    w_spec = pl.BlockSpec((tk, tn), lambda i, j, k: (k, j))
    o_spec = pl.BlockSpec((tm, tn), lambda i, j, k: (i, j))
    scratch = [pltpu.VMEM((tm, tn), jnp.float32)]
    cparams = pltpu.CompilerParams(
        dimension_semantics=("parallel", "parallel", "arbitrary"))

    if b is None:
        return pl.pallas_call(
            _matmul_kernel,
            out_shape=jax.ShapeDtypeStruct((M, N), x2d.dtype),
            grid=grid,
            in_specs=[x_spec, w_spec],
            out_specs=o_spec,
            scratch_shapes=scratch,
            compiler_params=cparams,
        )(x2d, w)

    b2 = b.reshape(1, N)
    b_spec = pl.BlockSpec((1, tn), lambda i, j, k: (0, j))
    return pl.pallas_call(
        _matmul_bias_kernel,
        out_shape=jax.ShapeDtypeStruct((M, N), x2d.dtype),
        grid=grid,
        in_specs=[x_spec, w_spec, b_spec],
        out_specs=o_spec,
        scratch_shapes=scratch,
        compiler_params=cparams,
    )(x2d, w, b2)


# ----------------------------------------------------------------------------
# Flash-style attention kernel on (B, seq, heads*dim_head) layout.
#
# Grid = (B, head_groups, q_tiles, kv_tiles); each step sees a head-group slab
# of width hg*dim_head (multiple of 128 lanes when possible -> lane-dense
# stores) and one KV tile.  Online softmax stats live in VMEM scratch.
# ----------------------------------------------------------------------------
def _flash_attention_kernel(q_ref, k_ref, v_ref, o_ref,
                            m_sc, l_sc, acc_sc, *, hg, dim_head, scale):
    ik = pl.program_id(3)
    nk = pl.num_programs(3)

    @pl.when(ik == 0)
    def _init():
        m_sc[...] = jnp.full(m_sc.shape, -jnp.inf, m_sc.dtype)
        l_sc[...] = jnp.zeros(l_sc.shape, l_sc.dtype)
        acc_sc[...] = jnp.zeros(acc_sc.shape, acc_sc.dtype)

    # Statically unrolled loop over the (small) number of heads in this group.
    for h in range(hg):
        c0, c1 = h * dim_head, (h + 1) * dim_head
        # Native-dtype MXU inputs (no f32 upcast); scale q (tq x d), not sim.
        qh = q_ref[:, c0:c1] * scale                      # (tq, d)
        kh = k_ref[:, c0:c1]                              # (tk, d)
        vh = v_ref[:, c0:c1]                              # (tk, d)

        # sim = q @ k^T, f32 accumulation on the MXU (no explicit transpose).
        sim = jax.lax.dot_general(
            qh, kh, (((1,), (1,)), ((), ())),
            preferred_element_type=jnp.float32)           # (tq, tk) f32

        m_prev = m_sc[h]                                  # (tq, 1)
        m_new = jnp.maximum(m_prev, jnp.max(sim, axis=-1, keepdims=True))
        alpha = jnp.exp(m_prev - m_new)                   # (tq, 1)
        p = jnp.exp(sim - m_new)                          # (tq, tk) f32

        l_sc[h] = alpha * l_sc[h] + jnp.sum(p, axis=-1, keepdims=True)
        acc_sc[h] = alpha * acc_sc[h] + jnp.dot(
            p.astype(vh.dtype), vh, preferred_element_type=jnp.float32)
        m_sc[h] = m_new

    @pl.when(ik == nk - 1)
    def _finalize():
        # Normalize the (tq, d) accumulator (not the (tq, tk) probabilities)
        # with an approx reciprocal (EUP slot), then emit one lane-dense
        # (tq, hg*dim_head) store.
        outs = []
        for h in range(hg):
            inv_l = pl.reciprocal(l_sc[h], approx=True)   # (tq, 1)
            outs.append((acc_sc[h] * inv_l).astype(o_ref.dtype))
        o_ref[...] = jnp.concatenate(outs, axis=-1)
        # TODO(synk): optionally fuse the to_out projection (wo, bo) here to
        # save one HBM round trip of the attention output.


def pallas_flash_attention(q_arr, k_arr, v_arr, *, heads, dim_head, hg,
                           q_col_off, k_col_off, v_col_off,
                           n_q, n_kv, out_dtype, scale,
                           tq_pref=256, tkv_pref=256):
    """Attention over head-group column slabs.

    q_arr/k_arr/v_arr: (B, seq, C) arrays; the head-group slab for grid index g
    is the column block `*_col_off + g` of width hg*dim_head (this is how the
    fused q/kv/qkv projections are consumed without splitting them)."""
    B = q_arr.shape[0]
    inner = heads * dim_head
    hgw = hg * dim_head
    G = heads // hg
    tq = _pick_tile(n_q, tq_pref, 8)
    tkv = _pick_tile(n_kv, tkv_pref, 8)
    grid = (B, G, n_q // tq, n_kv // tkv)

    kernel = functools.partial(_flash_attention_kernel,
                               hg=hg, dim_head=dim_head, scale=scale)
    return pl.pallas_call(
        kernel,
        out_shape=jax.ShapeDtypeStruct((B, n_q, inner), out_dtype),
        grid=grid,
        in_specs=[
            pl.BlockSpec((pl.Squeezed(), tq, hgw),
                         lambda b, g, iq, ik: (b, iq, q_col_off + g)),
            pl.BlockSpec((pl.Squeezed(), tkv, hgw),
                         lambda b, g, iq, ik: (b, ik, k_col_off + g)),
            pl.BlockSpec((pl.Squeezed(), tkv, hgw),
                         lambda b, g, iq, ik: (b, ik, v_col_off + g)),
        ],
        out_specs=pl.BlockSpec((pl.Squeezed(), tq, hgw),
                               lambda b, g, iq, ik: (b, iq, g)),
        scratch_shapes=[
            pltpu.VMEM((hg, tq, 1), jnp.float32),          # running max
            pltpu.VMEM((hg, tq, 1), jnp.float32),          # running sum
            pltpu.VMEM((hg, tq, dim_head), jnp.float32),   # output accumulator
        ],
        compiler_params=pltpu.CompilerParams(
            dimension_semantics=("parallel", "parallel", "parallel",
                                 "arbitrary")),
    )(q_arr, k_arr, v_arr)


def _head_group(heads, dim_head):
    """Smallest head group whose lane width is a multiple of 128; else all."""
    for hg in range(1, heads + 1):
        if heads % hg == 0 and (hg * dim_head) % 128 == 0:
            return hg
    return heads


# ----------------------------------------------------------------------------
# CrossAttention module forward
# ----------------------------------------------------------------------------
def init_cross_attention_params(key, query_dim, context_dim=None, heads=8,
                                dim_head=64, dtype=jnp.float32):
    context_dim = query_dim if context_dim is None else context_dim
    inner_dim = heads * dim_head
    k1, k2, k3, k4 = jax.random.split(key, 4)

    def xavier(k, fan_in, fan_out):
        limit = (6.0 / (fan_in + fan_out)) ** 0.5
        return jax.random.uniform(k, (fan_in, fan_out), dtype, -limit, limit)

    return {
        "wq": xavier(k1, query_dim, inner_dim),
        "wk": xavier(k2, context_dim, inner_dim),
        "wv": xavier(k3, context_dim, inner_dim),
        "wo": xavier(k4, inner_dim, query_dim),
        "bo": jnp.zeros((query_dim,), dtype),
    }


def cross_attention_forward(params, x, context=None, *, heads, dim_head):
    # TODO(synk): optional boolean `mask` path (masked_fill before softmax) not wired in.
    B, N, query_dim = x.shape
    inner = heads * dim_head
    scale = dim_head ** -0.5

    hg = _head_group(heads, dim_head)
    hgw = hg * dim_head
    G = heads // hg
    fused_ok = (hgw % 128 == 0)   # column-block slicing of fused activations is legal

    attn = functools.partial(pallas_flash_attention, heads=heads,
                             dim_head=dim_head, hg=hg, out_dtype=x.dtype,
                             scale=scale)

    if context is None:
        M = N
        x2d = x.reshape(B * N, query_dim)
        if fused_ok:
            # Fused QKV projection: x is read from HBM once.
            w_qkv = jnp.concatenate([params["wq"], params["wk"], params["wv"]],
                                    axis=1)
            qkv = pallas_matmul(x2d, w_qkv).reshape(B, N, 3 * inner)
            out = attn(qkv, qkv, qkv, q_col_off=0, k_col_off=G, v_col_off=2 * G,
                       n_q=N, n_kv=M)
        else:
            q = pallas_matmul(x2d, params["wq"]).reshape(B, N, inner)
            k = pallas_matmul(x2d, params["wk"]).reshape(B, N, inner)
            v = pallas_matmul(x2d, params["wv"]).reshape(B, N, inner)
            out = attn(q, k, v, q_col_off=0, k_col_off=0, v_col_off=0,
                       n_q=N, n_kv=M)
    else:
        _, M, ctx_dim = context.shape
        x2d = x.reshape(B * N, query_dim)
        c2d = context.reshape(B * M, ctx_dim)
        q = pallas_matmul(x2d, params["wq"]).reshape(B, N, inner)
        if fused_ok:
            # Fused KV projection: context is read from HBM once.
            w_kv = jnp.concatenate([params["wk"], params["wv"]], axis=1)
            kv = pallas_matmul(c2d, w_kv).reshape(B, M, 2 * inner)
            out = attn(q, kv, kv, q_col_off=0, k_col_off=0, v_col_off=G,
                       n_q=N, n_kv=M)
        else:
            k = pallas_matmul(c2d, params["wk"]).reshape(B, M, inner)
            v = pallas_matmul(c2d, params["wv"]).reshape(B, M, inner)
            out = attn(q, k, v, q_col_off=0, k_col_off=0, v_col_off=0,
                       n_q=N, n_kv=M)

    # to_out: Linear(inner, query_dim) + Dropout(0.0) (identity at eval).
    out = pallas_matmul(out.reshape(B * N, inner), params["wo"], params["bo"])
    return out.reshape(B, N, query_dim)


# ----------------------------------------------------------------------------
# Pure-JAX reference for correctness check
# ----------------------------------------------------------------------------
def reference_forward(params, x, context=None, *, heads, dim_head):
    B, N, _ = x.shape
    ctx = x if context is None else context
    _, M, _ = ctx.shape
    scale = dim_head ** -0.5
    q = x @ params["wq"]
    k = ctx @ params["wk"]
    v = ctx @ params["wv"]
    q = q.reshape(B, N, heads, dim_head).transpose(0, 2, 1, 3)
    k = k.reshape(B, M, heads, dim_head).transpose(0, 2, 1, 3)
    v = v.reshape(B, M, heads, dim_head).transpose(0, 2, 1, 3)
    sim = jnp.einsum("bhid,bhjd->bhij", q, k) * scale
    attn = jax.nn.softmax(sim, axis=-1)
    out = jnp.einsum("bhij,bhjd->bhid", attn, v)
    out = out.transpose(0, 2, 1, 3).reshape(B, N, heads * dim_head)
    return out @ params["wo"] + params["bo"]


if __name__ == "__main__":
    # Small shapes consistent with the module (dim_head=64 as in the default).
    B, N, M = 2, 16, 8
    query_dim, context_dim = 32, 32
    heads, dim_head = 2, 64            # inner = 128 -> lane-dense head groups

    key = jax.random.PRNGKey(0)
    kp, kx, kc = jax.random.split(key, 3)
    params = init_cross_attention_params(kp, query_dim, context_dim,
                                         heads=heads, dim_head=dim_head)
    x = jax.random.normal(kx, (B, N, query_dim), jnp.float32)
    context = jax.random.normal(kc, (B, M, context_dim), jnp.float32)

    # cross-attention (explicit context) and self-attention (context=None)
    out_cross = cross_attention_forward(params, x, context,
                                        heads=heads, dim_head=dim_head)
    out_self = cross_attention_forward(params, x, None,
                                       heads=heads, dim_head=dim_head)
    jax.block_until_ready(out_cross)
    jax.block_until_ready(out_self)

    ref_cross = reference_forward(params, x, context,
                                  heads=heads, dim_head=dim_head)
    ref_self = reference_forward(params, x, None,
                                 heads=heads, dim_head=dim_head)
    assert out_cross.shape == (B, N, query_dim)
    assert out_self.shape == (B, N, query_dim)
    # Tolerance accounts for the approx (EUP) reciprocal in the flash finalize.
    assert jnp.allclose(out_cross, ref_cross, atol=1e-2, rtol=1e-2)
    assert jnp.allclose(out_self, ref_self, atol=1e-2, rtol=1e-2)

    print("KERNEL_OK")
</pallas_src>

<mosaic_0001>
module attributes {stable_mosaic.version = 11 : i64} {
  func.func @_matmul_kernel(%arg0: i32, %arg1: i32, %arg2: i32, %arg3: memref<32x32xf32, #tpu.memory_space<vmem>>, %arg4: memref<32x128xf32, #tpu.memory_space<vmem>>, %arg5: memref<32x128xf32, #tpu.memory_space<vmem>>, %arg6: memref<32x128xf32, #tpu.memory_space<vmem>>) attributes {dimension_semantics = [#tpu.dimension_semantics<parallel>, #tpu.dimension_semantics<parallel>, #tpu.dimension_semantics<arbitrary>], iteration_bounds = array<i64: 1, 1, 1>, scalar_prefetch = 0 : i64, scratch_operands = 1 : i64, tpu.core_type = #tpu.core_type<tc>, window_params = [{transform_indices = @transform_0, window_bounds = array<i64: 32, 32>}, {transform_indices = @transform_1, window_bounds = array<i64: 32, 128>}, {transform_indices = @transform_2, window_bounds = array<i64: 32, 128>}]} {
    %c0_i32 = arith.constant 0 : i32
    %0 = arith.cmpi eq, %arg2, %c0_i32 : i32
    %1 = arith.extui %0 : i1 to i32
    %c0_i32_0 = arith.constant 0 : i32
    %2 = arith.cmpi ne, %1, %c0_i32_0 : i32
    scf.if %2 {
      %cst_10 = arith.constant 0.000000e+00 : f32
      %12 = vector.broadcast %cst_10 : f32 to vector<32x128xf32>
      %c0_11 = arith.constant 0 : index
      %c0_12 = arith.constant 0 : index
      %13 = vector.load %arg6[%c0_11, %c0_12] : memref<32x128xf32, #tpu.memory_space<vmem>>, vector<32x128xf32>
      tpu.vector_store %arg6[%c0_11, %c0_12], %12 {strides = array<i32>} : memref<32x128xf32, #tpu.memory_space<vmem>>, vector<32x128xf32>,
    } else {
    }
    %c0 = arith.constant 0 : index
    %c0_1 = arith.constant 0 : index
    %3 = vector.load %arg6[%c0, %c0_1] : memref<32x128xf32, #tpu.memory_space<vmem>>, vector<32x128xf32>
    %c0_2 = arith.constant 0 : index
    %c0_3 = arith.constant 0 : index
    %4 = vector.load %arg3[%c0_2, %c0_3] : memref<32x32xf32, #tpu.memory_space<vmem>>, vector<32x32xf32>
    %c0_4 = arith.constant 0 : index
    %c0_5 = arith.constant 0 : index
    %5 = vector.load %arg4[%c0_4, %c0_5] : memref<32x128xf32, #tpu.memory_space<vmem>>, vector<32x128xf32>
    %cst = arith.constant dense<0.000000e+00> : vector<32x128xf32>
    %6 = tpu.matmul %4, %5, %cst {dimension_numbers = #tpu.dot_dimension_numbers<[1], [0], [0], [1], [0, 0, 1, 1], [], []>} : vector<32x32xf32>, vector<32x128xf32>, vector<32x128xf32> -> vector<32x128xf32>
    %7 = arith.addf %3, %6 : vector<32x128xf32>
    %c0_6 = arith.constant 0 : index
    %c0_7 = arith.constant 0 : index
    %8 = vector.load %arg6[%c0_6, %c0_7] : memref<32x128xf32, #tpu.memory_space<vmem>>, vector<32x128xf32>
    tpu.vector_store %arg6[%c0_6, %c0_7], %7 {strides = array<i32>} : memref<32x128xf32, #tpu.memory_space<vmem>>, vector<32x128xf32>,
    %c0_i32_8 = arith.constant 0 : i32
    %9 = arith.cmpi eq, %arg2, %c0_i32_8 : i32
    %10 = arith.extui %9 : i1 to i32
    %c0_i32_9 = arith.constant 0 : i32
    %11 = arith.cmpi ne, %10, %c0_i32_9 : i32
    scf.if %11 {
      %c0_10 = arith.constant 0 : index
      %c0_11 = arith.constant 0 : index
      %12 = vector.load %arg6[%c0_10, %c0_11] : memref<32x128xf32, #tpu.memory_space<vmem>>, vector<32x128xf32>
      %c0_12 = arith.constant 0 : index
      %c0_13 = arith.constant 0 : index
      %13 = vector.load %arg5[%c0_12, %c0_13] : memref<32x128xf32, #tpu.memory_space<vmem>>, vector<32x128xf32>
      tpu.vector_store %arg5[%c0_12, %c0_13], %12 {strides = array<i32>} : memref<32x128xf32, #tpu.memory_space<vmem>>, vector<32x128xf32>,
    } else {
    }
    return
  }
  func.func @transform_0(%arg0: i32, %arg1: i32, %arg2: i32) -> (i32, i32) {
    %c0_i32 = arith.constant 0 : i32
    return %arg0, %arg2 : i32, i32
  }
  func.func @transform_1(%arg0: i32, %arg1: i32, %arg2: i32) -> (i32, i32) {
    %c0_i32 = arith.constant 0 : i32
    return %arg2, %arg1 : i32, i32
  }
  func.func @transform_2(%arg0: i32, %arg1: i32, %arg2: i32) -> (i32, i32) {
    %c0_i32 = arith.constant 0 : i32
    return %arg0, %arg1 : i32, i32
  }
}

</mosaic_0001>

<llo_original>
// kernel: tpu_custom_call.1
$region0: #{tpu_custom_call.1}
  #allocation0 [shape = 'u32[]', space=smem, size = 0x4, offset = 0x4, fixed_abs, tag = 'smem constant byte address 0x4 - core index']
  #allocation1 [shape = 'u32[144,128]{1,0:T(1,128)}', space=vmem, size = 0x12000, scoped, tag = 'internal scratch']
  #allocation2 [shape = 'f32[32,128]{1,0:T(8,128)}', space=vmem, size = 0x4000, scoped, tag = 'scratch operand']
  %s0 = inlined_call_operand.hbm [shape: f32[32,32], index: 0, kind: input, shape index: {}]
  %s1 = inlined_call_operand.hbm [shape: f32[32,128], index: 1, kind: input, shape index: {}]
  %s2 = inlined_call_operand.hbm [shape: f32[32,128], index: 2, kind: output, shape index: {}]
  %s3 = sld [smem:[#allocation0]]
  $region34: #{tpu_custom_call.1} parent=0
    _
  %s5 = ssub.s32 1, %s3
  %s6 = scalar_select 0, %s5, %s3
  $region1: #{tpu_custom_call.1} parent=0
    #allocation3 [shape = 'u8[16384]{0}', space=vmem, size = 0x4000, scoped, tag = 'input window, operand 0, single buffered']
    #allocation4 [shape = 's32[1]{0}', space=sflag, size = 0x4, scoped, tag = 'scoped memory for tpu_custom_call.1']
    #allocation5 [shape = 's32[1]{0}', space=sflag, size = 0x4, scoped, tag = 'scoped memory for tpu_custom_call.1']
    #allocation6 [shape = 'u8[16384]{0}', space=vmem, size = 0x4000, scoped, tag = 'input window, operand 1, single buffered']
    #allocation7 [shape = 's32[1]{0}', space=sflag, size = 0x4, scoped, tag = 'scoped memory for tpu_custom_call.1']
    #allocation8 [shape = 'u8[16384]{0}', space=vmem, size = 0x4000, scoped, tag = 'output window, operand 0, single buffered']
    %7 = vsyncpa [#allocation4], 0
    %8 = vsyncpa [#allocation7], 0
    %9 = vsyncpa [#allocation5], 0
    // Predicated region
    $region2: #{tpu_custom_call.1} parent=1 // pred_check
      _
    $region3: #{tpu_custom_call.1} parent=1 // pred_check_branch
      %11 = sbr.rel (0) target = $region5
    $region4: #{tpu_custom_call.1} parent=1 // pred_region
      %s13 = ssub.s32 512, 512
      %14 = vsyncadd [#allocation4], %s13
      %s15 = sshll.u32 [#allocation3], 4
      %s16 = int_to_ptr.vmem [resolvable:$true] %s15
      %21 = dma.hbm_to_vmem [thread:$0]  %s0, 512, %s16, [#allocation4], 128, 128, 8
    $region5: #{tpu_custom_call.1} parent=1 // pred_fallthru
      _
    // Predicated region
    $region6: #{tpu_custom_call.1} parent=1 // pred_check
      _
    $region7: #{tpu_custom_call.1} parent=1 // pred_check_branch
      %23 = sbr.rel (0) target = $region9
    $region8: #{tpu_custom_call.1} parent=1 // pred_region
      %s25 = ssub.s32 512, 512
      %26 = vsyncadd [#allocation7], %s25
      %s27 = sshll.u32 [#allocation6], 4
      %s28 = int_to_ptr.vmem [resolvable:$true] %s27
      %33 = dma.hbm_to_vmem [thread:$0]  %s1, 512, %s28, [#allocation7], 128, 128, 8
    $region9: #{tpu_custom_call.1} parent=1 // pred_fallthru
      _
    // Predicated region
    $region10: #{tpu_custom_call.1} parent=1 // pred_check
      _
    $region11: #{tpu_custom_call.1} parent=1 // pred_check_branch
      %35 = sbr.rel (0) target = $region13
    $region12: #{tpu_custom_call.1} parent=1 // pred_region
      %36 = dma.done [#allocation4], 512
    $region13: #{tpu_custom_call.1} parent=1 // pred_fallthru
      _
    // Predicated region
    $region14: #{tpu_custom_call.1} parent=1 // pred_check
      _
    $region15: #{tpu_custom_call.1} parent=1 // pred_check_branch
      %38 = sbr.rel (0) target = $region17
    $region16: #{tpu_custom_call.1} parent=1 // pred_region
      %39 = dma.done [#allocation7], 512
    $region17: #{tpu_custom_call.1} parent=1 // pred_fallthru
      _
    %p40 = scmp.eq.s32.totalorder 0, 0
    // Predicated region
    $region18: #{tpu_custom_call.1} parent=1 // pred_check
      %p41 = pneg %p40
    $region19: #{tpu_custom_call.1} parent=1 // pred_check_branch
      %43 = sbr.rel (%p41) target = $region21
    $region20: #{tpu_custom_call.1} parent=1 // pred_region
      %44 = vst [vmem:[#allocation2] sm:$0xff] 0.0
      %45 = vst [vmem:[#allocation2 + $0x8] sm:$0xff] 0.0
      %46 = vst [vmem:[#allocation2 + $0x10] sm:$0xff] 0.0
      %47 = vst [vmem:[#allocation2 + $0x18] sm:$0xff] 0.0
    $region21: #{tpu_custom_call.1} parent=1 // pred_fallthru
      _
    %v48 = vld [vmem:[#allocation2] sm:$0xff]
    %v49 = vld [vmem:[#allocation2 + $0x8] sm:$0xff]
    %v50 = vld [vmem:[#allocation2 + $0x10] sm:$0xff]
    %v51 = vld [vmem:[#allocation2 + $0x18] sm:$0xff]
    %v52 = vld [vmem:[#allocation3] sm:$0xff]
    %v53 = vld [vmem:[#allocation3 + $0x8] sm:$0xff]
    %v54 = vld [vmem:[#allocation3 + $0x10] sm:$0xff]
    %v55 = vld [vmem:[#allocation3 + $0x18] sm:$0xff]
    %v56 = vld [vmem:[#allocation6] sm:$0xff]
    %v57 = vld [vmem:[#allocation6 + $0x8] sm:$0xff]
    %v58 = vld [vmem:[#allocation6 + $0x10] sm:$0xff]
    %v59 = vld [vmem:[#allocation6 + $0x18] sm:$0xff]
    %vm60 = vcmask 261120
    %v62 = vsel %vm60, %v52, 0
    %v65 = vsel %vm60, %v53, 0
    %v68 = vsel %vm60, %v54, 0
    %v71 = vsel %vm60, %v55, 0
    %73 = vmatprep.subr.mxu0 0.0
    %74 = vmatpush1.msra.mxu0 0.0
    %75 = vmatprep.subr.mxu0 0.0
    %76 = vmatpush1.msra.mxu0 0.0
    %77 = vmatprep.subr.mxu0 0.0
    %78 = vmatpush1.msra.mxu0 0.0
    %79 = vmatprep.subr.mxu0 0.0
    %80 = vmatpush1.msra.mxu0 0.0
    %81 = vmatprep.subr.mxu0 0.0
    %82 = vmatpush1.msra.mxu0 0.0
    %83 = vmatprep.subr.mxu0 0.0
    %84 = vmatpush1.msra.mxu0 0.0
    %85 = vmatprep.subr.mxu0 0.0
    %86 = vmatpush1.msra.mxu0 0.0
    %87 = vmatprep.subr.mxu0 0.0
    %88 = vmatpush1.msra.mxu0 0.0
    %89 = vmatprep.subr.mxu0 0.0
    %90 = vmatpush1.msra.mxu0 0.0
    %91 = vmatprep.subr.mxu0 0.0
    %92 = vmatpush1.msra.mxu0 0.0
    %93 = vmatprep.subr.mxu0 0.0
    %94 = vmatpush1.msra.mxu0 0.0
    %95 = vmatprep.subr.mxu0 0.0
    %96 = vmatpush1.msra.mxu0 0.0
    %97 = vmatprep.subr.mxu0 0.0
    %98 = vmatpush1.msra.mxu0 %v59
    %99 = vmatprep.subr.mxu0 0.0
    %100 = vmatpush1.msra.mxu0 %v58
    %101 = vmatprep.subr.mxu0 0.0
    %102 = vmatpush1.msra.mxu0 %v57
    %103 = vmatprep.subr.mxu0 0.0
    %104 = vmatpush1.msra.mxu0 %v56
    %105 = vmatprep.subr.mxu0 0.0
    %106 = vmatpush2.msra.mxu0 0.0
    %107 = vmatprep.subr.mxu0 0.0
    %108 = vmatpush2.msra.mxu0 0.0
    %109 = vmatprep.subr.mxu0 0.0
    %110 = vmatpush2.msra.mxu0 0.0
    %111 = vmatprep.subr.mxu0 0.0
    %112 = vmatpush2.msra.mxu0 0.0
    %113 = vmatprep.subr.mxu0 0.0
    %114 = vmatpush2.msra.mxu0 0.0
    %115 = vmatprep.subr.mxu0 0.0
    %116 = vmatpush2.msra.mxu0 0.0
    %117 = vmatprep.subr.mxu0 0.0
    %118 = vmatpush2.msra.mxu0 0.0
    %119 = vmatprep.subr.mxu0 0.0
    %120 = vmatpush2.msra.mxu0 0.0
    %121 = vmatprep.subr.mxu0 0.0
    %122 = vmatpush2.msra.mxu0 0.0
    %123 = vmatprep.subr.mxu0 0.0
    %124 = vmatpush2.msra.mxu0 0.0
    %125 = vmatprep.subr.mxu0 0.0
    %126 = vmatpush2.msra.mxu0 0.0
    %127 = vmatprep.subr.mxu0 0.0
    %128 = vmatpush2.msra.mxu0 0.0
    %129 = vmatprep.subr.mxu0 0.0
    %130 = vmatpush2.msra.mxu0 0.0
    %131 = vmatprep.subr.mxu0 0.0
    %132 = vmatpush2.msra.mxu0 0.0
    %133 = vmatprep.subr.mxu0 0.0
    %134 = vmatpush2.msra.mxu0 0.0
    %135 = vmatprep.subr.mxu0 0.0
    %136 = vmatpush2.msra.mxu0 0.0
    %137 = vmatprep.mubr.f32.mxu0 0.0
    %138 = vmatmul.mubr.f32.gmra.mxu0 %v62
    %v139 = vpop.f32.mrf.mxu0
    %v140 = vadd.f32 0.0, %v139
    %v141 = vpop.f32.mrf.mxu0
    %142 = vmatprep.mubr.f32.mxu0 0.0
    %143 = vmatmul.mubr.f32.gmra.mxu0 %v65
    %v144 = vpop.f32.mrf.mxu0
    %v145 = vadd.f32 0.0, %v144
    %v146 = vpop.f32.mrf.mxu0
    %147 = vmatprep.mubr.f32.mxu0 0.0
    %148 = vmatmul.mubr.f32.gmra.mxu0 %v68
    %v149 = vpop.f32.mrf.mxu0
    %v150 = vadd.f32 0.0, %v149
    %v151 = vpop.f32.mrf.mxu0
    %152 = vmatprep.mubr.f32.mxu0 0.0
    %153 = vmatmul.mubr.f32.gmra.mxu0 %v71
    %v154 = vpop.f32.mrf.mxu0
    %v155 = vadd.f32 0.0, %v154
    %v156 = vpop.f32.mrf.mxu0
    %157 = vdwg.mxu0
    %v158 = vadd.f32 %v48, %v140
    %v159 = vadd.f32 %v49, %v145
    %v160 = vadd.f32 %v50, %v150
    %v161 = vadd.f32 %v51, %v155
    %162 = vst [vmem:[#allocation2] sm:$0xff] %v158
    %163 = vst [vmem:[#allocation2 + $0x8] sm:$0xff] %v159
    %164 = vst [vmem:[#allocation2 + $0x10] sm:$0xff] %v160
    %165 = vst [vmem:[#allocation2 + $0x18] sm:$0xff] %v161
    // Predicated region
    $region22: #{tpu_custom_call.1} parent=1 // pred_check
      %p166 = pneg %p40
    $region23: #{tpu_custom_call.1} parent=1 // pred_check_branch
      %168 = sbr.rel (%p166) target = $region25
    $region24: #{tpu_custom_call.1} parent=1 // pred_region
      %v169 = vld [vmem:[#allocation2] sm:$0xff]
      %v170 = vld [vmem:[#allocation2 + $0x8] sm:$0xff]
      %v171 = vld [vmem:[#allocation2 + $0x10] sm:$0xff]
      %v172 = vld [vmem:[#allocation2 + $0x18] sm:$0xff]
      %173 = vst [vmem:[#allocation8] sm:$0xff] %v169
      %174 = vst [vmem:[#allocation8 + $0x8] sm:$0xff] %v170
      %175 = vst [vmem:[#allocation8 + $0x10] sm:$0xff] %v171
      %176 = vst [vmem:[#allocation8 + $0x18] sm:$0xff] %v172
    $region25: #{tpu_custom_call.1} parent=1 // pred_fallthru
      _
    // Predicated region
    $region26: #{tpu_custom_call.1} parent=1 // pred_check
      _
    $region27: #{tpu_custom_call.1} parent=1 // pred_check_branch
      %178 = sbr.rel (0) target = $region29
    $region28: #{tpu_custom_call.1} parent=1 // pred_region
      %s180 = ssub.s32 512, 512
      %181 = vsyncadd [#allocation5], %s180
      %s182 = sshll.u32 [#allocation8], 4
      %s183 = int_to_ptr.vmem [resolvable:$true] %s182
      %188 = dma.vmem_to_hbm [thread:$0]  %s183, 512, %s2, [#allocation5], 128, 128, 8
    $region29: #{tpu_custom_call.1} parent=1 // pred_fallthru
      _
    // Predicated region
    $region30: #{tpu_custom_call.1} parent=1 // pred_check
      _
    $region31: #{tpu_custom_call.1} parent=1 // pred_check_branch
      %190 = sbr.rel (0) target = $region33
    $region32: #{tpu_custom_call.1} parent=1 // pred_region
      %191 = dma.done [#allocation5], 512
    $region33: #{tpu_custom_call.1} parent=1 // pred_fallthru
      _
    %192 = vsyncpa [#allocation4], 1
    %193 = vsyncpa [#allocation7], 1
    %194 = vsyncpa [#allocation5], 1

</llo_original>
